<compile_context>
chip_gen: v7x
topology: tpu7x:2x2x1
jax: 0.10.0
libtpu: 0.0.40
codegen_flags: <defaults>
</compile_context>

<pallas_src>
import functools

import jax
import jax.numpy as jnp
from jax.experimental import pallas as pl
from jax.experimental.pallas import tpu as pltpu


# ----------------------------------------------------------------------------
# Kernel
# ----------------------------------------------------------------------------
def _sdpa_kernel(inv_temp_ref,                      # SMEM scalar (prefetched)
                 q_ref, k_ref, v_ref,               # inputs
                 out_ref, attn_ref, log_ref, raw_ref,
                 *, fold_scale_into_q, mxu_bf16):
    """One (batch-tile, query-tile) step of scaled dot-product attention."""
    inv_t = inv_temp_ref[0]

    q = q_ref[...]          # (BT, TQ, D)
    k = k_ref[...]          # (BT, Lk, D)
    v = v_ref[...]          # (BT, Lk, Dv)

    if fold_scale_into_q:
        # f32 path: scale the (TQ, D) operand instead of the (TQ, Lk) scores.
        q = q * inv_t

    if mxu_bf16:
        qm, km = q.astype(jnp.bfloat16), k.astype(jnp.bfloat16)
    else:
        qm, km = q, k

    # scores = q @ k^T / temperature, contracted on the trailing feature dim
    # (no explicit K transpose); f32 accumulation on the MXU.
    s = jnp.einsum("bqd,bkd->bqk", qm, km,
                   preferred_element_type=jnp.float32)          # (BT, TQ, Lk)
    if not fold_scale_into_q:
        s = s * inv_t
    raw_ref[...] = s.astype(raw_ref.dtype)

    # Numerically stable softmax / log_softmax over the key axis (torch dim=2).
    m = jnp.max(s, axis=-1, keepdims=True)
    e = jnp.exp(s - m)
    denom = jnp.sum(e, axis=-1, keepdims=True)
    # Exact reciprocal of the tiny (BT, TQ, 1) tensor: the returned `attn`
    # (consumed directly by SnaTCHer) stays consistent with exp(log_attn).
    p = e * (1.0 / denom)

    log_ref[...] = (s - m - jnp.log(denom)).astype(log_ref.dtype)
    attn_ref[...] = p.astype(attn_ref.dtype)

    # TODO(synk): nn.Dropout(0.1) is identity in eval mode; training-mode
    # stochastic dropout (pltpu.prng_seed / prng_random_bits) not applied here.

    pv_dtype = jnp.bfloat16 if mxu_bf16 else v.dtype
    out = jnp.einsum("bqk,bkd->bqd", p.astype(pv_dtype), v.astype(pv_dtype),
                     preferred_element_type=jnp.float32)
    out_ref[...] = out.astype(out_ref.dtype)


# ----------------------------------------------------------------------------
# Tiling heuristics
# ----------------------------------------------------------------------------
def _vmem_capacity_bytes():
    """Physical VMEM of the attached chip; conservative fallback if unknown."""
    try:
        info = pltpu.get_tpu_info()
        cap = getattr(info, "vmem_capacity_bytes", None)
        if cap:
            return int(cap)
    except Exception:
        pass
    return 64 * 1024 * 1024   # v7x-sized fallback — safe on every generation


def _vmem_bytes(bt, tq, Lk, D, Dv, in_isz, out_isz, plane_isz):
    """Honest per-step VMEM estimate for a (bt, tq) tile choice."""
    # Pipeline blocks: Pallas double-buffers every blocked operand by default
    # (including the K/V blocks that only change on batch-tile transitions).
    buffered = 2 * bt * (
        tq * D * in_isz              # q block
        + Lk * D * in_isz            # k block (resident across qi)
        + Lk * Dv * in_isz           # v block (resident across qi)
        + tq * Dv * out_isz          # output block
        + 3 * tq * Lk * plane_isz)   # attn / log_attn / raw_attn blocks
    # Single-buffered in-kernel temporaries: s, e, p in f32 plus the cast of p
    # fed to the PV matmul, and the scaled/cast Q operand.
    scratch = bt * tq * Lk * (3 * 4 + max(in_isz, 2)) + bt * tq * D * 4
    return buffered + scratch


def _pick_tiles(B, Lq, Lk, D, Dv, in_isz, out_isz, plane_isz, budget):
    """Choose (batch_tile, query_tile) that fit the VMEM budget."""
    def fits(bt, tq):
        return _vmem_bytes(bt, tq, Lk, D, Dv, in_isz, out_isz, plane_isz) <= budget

    # MXU-friendly query tiles (>=128) or the full sequence; every candidate is
    # a multiple of 8 or equals Lq, satisfying the (8, 128) block-shape rule.
    if Lq >= 128:
        q_cands = sorted({t for t in (Lq, 512, 256, 128) if Lq % t == 0},
                         reverse=True)
    else:
        q_cands = [Lq]
    q_cands += [t for t in (64, 32, 16, 8) if Lq % t == 0 and t < Lq]

    tq = None
    for t in q_cands:
        if fits(1, t):
            tq = t
            break
    if tq is None:
        # TODO(synk): add an Lk-tiled two-pass (online-softmax) path so very
        # long key sequences fit; until then fail loudly instead of spilling.
        raise ValueError(
            "ScaledDotProductAttention Pallas kernel: K/V plus the (TQ, Lk) "
            f"attention planes do not fit in VMEM (Lk={Lk}, D={D}, Dv={Dv}, "
            f"budget={budget} B).")

    # Pack several batch elements per grid step when the per-batch tile is
    # small (amortizes the ~0.35 us per-step overhead).
    bt = 1
    for cand in range(B, 0, -1):
        if B % cand == 0 and fits(cand, tq):
            bt = cand
            break

    # Megacore: v7x has 2 TensorCores sharded over "parallel" grid axes — keep
    # at least 2 grid steps whenever the problem can be split (negligible cost
    # on single-core chips).
    if (B // bt) * (Lq // tq) < 2:
        if B >= 2:
            bt = max(c for c in range(1, B // 2 + 1) if B % c == 0)
        else:
            for t in (512, 256, 128, 64, 32, 16, 8):
                if t < tq and Lq % t == 0:
                    tq = t
                    break
    return bt, tq


# ----------------------------------------------------------------------------
# Public wrapper
# ----------------------------------------------------------------------------
def scaled_dot_product_attention(q, k, v, temperature, *,
                                 plane_dtype=None,
                                 mxu_bf16=False,
                                 tile_vmem_budget_bytes=None):
    """Forward pass of SnaTCHerF.ScaledDotProductAttention.

    Returns (output, attn, log_attn, raw_attn).

    Notes:
      * Dropout(0.1) is eval-mode identity (TODO(synk): training-mode dropout).
      * `plane_dtype` (e.g. jnp.bfloat16) shrinks the HBM writeback of the
        three (B, Lq, Lk) attention planes; default keeps q.dtype (reference
        semantics).  `mxu_bf16=True` feeds the MXUs bf16 operands (v6e/v7x).
      * TODO(synk): when Lk/Dv are not multiples of 128 the plane/output stores
        are lane-masked; a flattened lane-dense output layout would need an
        in-kernel relayout and is intentionally left out for portability.
    """
    B, Lq, D = q.shape
    Bk, Lk, Dk = k.shape
    Bv, Lkv, Dv = v.shape
    assert D == Dk and Bk == B and Bv == B and Lkv == Lk

    out_dtype = q.dtype
    plane_dtype = jnp.dtype(out_dtype) if plane_dtype is None else jnp.dtype(plane_dtype)

    in_isz = jnp.dtype(q.dtype).itemsize
    out_isz = jnp.dtype(out_dtype).itemsize
    plane_isz = plane_dtype.itemsize

    capacity = _vmem_capacity_bytes()
    vmem_limit = int(capacity * 0.75)                 # scoped VMEM given to Mosaic
    budget = (int(tile_vmem_budget_bytes) if tile_vmem_budget_bytes is not None
              else int(vmem_limit * 0.85))            # what the tile picker may use

    BT, TQ = _pick_tiles(B, Lq, Lk, D, Dv, in_isz, out_isz, plane_isz, budget)

    # Fold 1/temperature into Q only when the multiply stays in f32; for narrow
    # input dtypes scale the f32 scores instead (avoids pre-matmul rounding).
    fold_scale_into_q = (q.dtype == jnp.dtype(jnp.float32)) and not mxu_bf16
    kernel = functools.partial(_sdpa_kernel,
                               fold_scale_into_q=fold_scale_into_q,
                               mxu_bf16=mxu_bf16)

    # 1/temperature travels as a prefetched SMEM scalar -> no recompile per value.
    inv_temp = jnp.asarray([1.0 / float(temperature)], dtype=jnp.float32)

    out_shapes = (
        jax.ShapeDtypeStruct((B, Lq, Dv), out_dtype),    # output
        jax.ShapeDtypeStruct((B, Lq, Lk), plane_dtype),  # attn
        jax.ShapeDtypeStruct((B, Lq, Lk), plane_dtype),  # log_attn
        jax.ShapeDtypeStruct((B, Lq, Lk), plane_dtype),  # raw_attn
    )

    grid = (B // BT, Lq // TQ)

    grid_spec = pltpu.PrefetchScalarGridSpec(
        num_scalar_prefetch=1,
        grid=grid,
        in_specs=[
            pl.BlockSpec((BT, TQ, D), lambda bi, qi, it: (bi, qi, 0)),
            # K / V stay resident across the query-tile axis (same block index),
            # so they are only re-DMA'd when the batch tile changes.  They are
            # still double-buffered by the pipeline and accounted as such in
            # _vmem_bytes (TODO(synk): pl.Buffered(1) once universally safe).
            pl.BlockSpec((BT, Lk, D), lambda bi, qi, it: (bi, 0, 0)),
            pl.BlockSpec((BT, Lk, Dv), lambda bi, qi, it: (bi, 0, 0)),
        ],
        out_specs=[
            pl.BlockSpec((BT, TQ, Dv), lambda bi, qi, it: (bi, qi, 0)),
            pl.BlockSpec((BT, TQ, Lk), lambda bi, qi, it: (bi, qi, 0)),
            pl.BlockSpec((BT, TQ, Lk), lambda bi, qi, it: (bi, qi, 0)),
            pl.BlockSpec((BT, TQ, Lk), lambda bi, qi, it: (bi, qi, 0)),
        ],
    )

    return pl.pallas_call(
        kernel,
        out_shape=out_shapes,
        grid_spec=grid_spec,
        compiler_params=pltpu.CompilerParams(
            dimension_semantics=("parallel", "parallel"),
            vmem_limit_bytes=vmem_limit,
        ),
    )(inv_temp, q, k, v)


# ----------------------------------------------------------------------------
# Reference + self-test
# ----------------------------------------------------------------------------
def _reference(q, k, v, temperature):
    attn = jnp.einsum("bqd,bkd->bqk", q, k) / temperature
    raw = attn
    log_attn = jax.nn.log_softmax(attn, axis=2)
    p = jax.nn.softmax(attn, axis=2)
    out = jnp.einsum("bqk,bkd->bqd", p, v)
    return out, p, log_attn, raw


def _check(name, got, want, atol, rtol):
    got32 = got.astype(jnp.float32)
    want32 = want.astype(jnp.float32)
    if not jnp.allclose(got32, want32, atol=atol, rtol=rtol):
        diff = float(jnp.max(jnp.abs(got32 - want32)))
        raise AssertionError(f"{name}: max abs diff {diff}")


if __name__ == "__main__":
    # --- Case 1: small SnaTCHer-like shapes (whole problem per grid step,
    #     batch split across the grid for megacore). --------------------------
    B, Lq, Lk, D, Dv = 2, 8, 8, 32, 32
    temperature = float(D) ** 0.5
    kq, kk, kv = jax.random.split(jax.random.PRNGKey(0), 3)
    q = jax.random.normal(kq, (B, Lq, D), dtype=jnp.float32)
    k = jax.random.normal(kk, (B, Lk, D), dtype=jnp.float32)
    v = jax.random.normal(kv, (B, Lk, Dv), dtype=jnp.float32)

    outs = scaled_dot_product_attention(q, k, v, temperature)
    jax.block_until_ready(outs)
    refs = _reference(q, k, v, temperature)
    for name, g, r in zip(("output", "attn", "log_attn", "raw_attn"), outs, refs):
        _check(name, g, r, atol=5e-4, rtol=5e-4)

    # --- Case 2: larger shapes with a deliberately small tile budget so the
    #     query-tiling / multi-step pipeline path is exercised. ---------------
    B, Lq, Lk, D, Dv = 2, 256, 128, 64, 64
    temperature = float(D) ** 0.5
    kq, kk, kv = jax.random.split(jax.random.PRNGKey(1), 3)
    q = jax.random.normal(kq, (B, Lq, D), dtype=jnp.float32)
    k = jax.random.normal(kk, (B, Lk, D), dtype=jnp.float32)
    v = jax.random.normal(kv, (B, Lk, Dv), dtype=jnp.float32)

    outs = scaled_dot_product_attention(q, k, v, temperature,
                                        tile_vmem_budget_bytes=1 << 20)
    jax.block_until_ready(outs)
    refs = _reference(q, k, v, temperature)
    for name, g, r in zip(("output", "attn", "log_attn", "raw_attn"), outs, refs):
        _check(name, g, r, atol=5e-4, rtol=5e-4)

    print("KERNEL_OK")
</pallas_src>

<mosaic_0001>
module attributes {stable_mosaic.version = 11 : i64} {
  func.func @_sdpa_kernel(%arg0: i32, %arg1: i32, %arg2: memref<1xf32, #tpu.memory_space<smem>>, %arg3: memref<1x8x32xf32, #tpu.memory_space<vmem>>, %arg4: memref<1x8x32xf32, #tpu.memory_space<vmem>>, %arg5: memref<1x8x32xf32, #tpu.memory_space<vmem>>, %arg6: memref<1x8x32xf32, #tpu.memory_space<vmem>>, %arg7: memref<1x8x8xf32, #tpu.memory_space<vmem>>, %arg8: memref<1x8x8xf32, #tpu.memory_space<vmem>>, %arg9: memref<1x8x8xf32, #tpu.memory_space<vmem>>) attributes {dimension_semantics = [#tpu.dimension_semantics<parallel>, #tpu.dimension_semantics<parallel>], iteration_bounds = array<i64: 2, 1>, scalar_prefetch = 1 : i64, scratch_operands = 0 : i64, tpu.core_type = #tpu.core_type<tc>, window_params = [{transform_indices = @transform_0, window_bounds = array<i64: 1, 8, 32>}, {transform_indices = @transform_1, window_bounds = array<i64: 1, 8, 32>}, {transform_indices = @transform_2, window_bounds = array<i64: 1, 8, 32>}, {transform_indices = @transform_3, window_bounds = array<i64: 1, 8, 32>}, {transform_indices = @transform_4, window_bounds = array<i64: 1, 8, 8>}, {transform_indices = @transform_5, window_bounds = array<i64: 1, 8, 8>}, {transform_indices = @transform_6, window_bounds = array<i64: 1, 8, 8>}]} {
    %c0 = arith.constant 0 : index
    %0 = memref.load %arg2[%c0] : memref<1xf32, #tpu.memory_space<smem>>
    %c0_0 = arith.constant 0 : index
    %c0_1 = arith.constant 0 : index
    %c0_2 = arith.constant 0 : index
    %1 = vector.load %arg3[%c0_0, %c0_1, %c0_2] : memref<1x8x32xf32, #tpu.memory_space<vmem>>, vector<1x8x32xf32>
    %c0_3 = arith.constant 0 : index
    %c0_4 = arith.constant 0 : index
    %c0_5 = arith.constant 0 : index
    %2 = vector.load %arg4[%c0_3, %c0_4, %c0_5] : memref<1x8x32xf32, #tpu.memory_space<vmem>>, vector<1x8x32xf32>
    %c0_6 = arith.constant 0 : index
    %c0_7 = arith.constant 0 : index
    %c0_8 = arith.constant 0 : index
    %3 = vector.load %arg5[%c0_6, %c0_7, %c0_8] : memref<1x8x32xf32, #tpu.memory_space<vmem>>, vector<1x8x32xf32>
    %4 = vector.broadcast %0 : f32 to vector<1x8x32xf32>
    %5 = arith.mulf %1, %4 : vector<1x8x32xf32>
    "tpu.trace_start"() <{level = 10 : i32, message = "bqd,bkd->bqk"}> : () -> ()
    %cst = arith.constant dense<0.000000e+00> : vector<1x8x8xf32>
    %6 = tpu.matmul %5, %2, %cst {dimension_numbers = #tpu.dot_dimension_numbers<[2], [2], [1], [1], [0, 0, 0, 1, 1, 1], [0], [0]>} : vector<1x8x32xf32>, vector<1x8x32xf32>, vector<1x8x8xf32> -> vector<1x8x8xf32>
    "tpu.trace_stop"() : () -> ()
    %c0_9 = arith.constant 0 : index
    %c0_10 = arith.constant 0 : index
    %c0_11 = arith.constant 0 : index
    %7 = vector.load %arg9[%c0_9, %c0_10, %c0_11] : memref<1x8x8xf32, #tpu.memory_space<vmem>>, vector<1x8x8xf32>
    tpu.vector_store %arg9[%c0_9, %c0_10, %c0_11], %6 {strides = array<i32>} : memref<1x8x8xf32, #tpu.memory_space<vmem>>, vector<1x8x8xf32>,
    %cst_12 = arith.constant dense<0xFF800000> : vector<1x8xf32>
    %8 = vector.multi_reduction <maximumf>, %6, %cst_12 [2] : vector<1x8x8xf32> to vector<1x8xf32>
    %9 = vector.shape_cast %8 : vector<1x8xf32> to vector<1x8x1xf32>
    %10 = vector.broadcast %9 : vector<1x8x1xf32> to vector<1x8x8xf32>
    %11 = arith.subf %6, %10 : vector<1x8x8xf32>
    %12 = math.exp %11 : vector<1x8x8xf32>
    %cst_13 = arith.constant dense<0.000000e+00> : vector<1x8xf32>
    %13 = vector.multi_reduction <add>, %12, %cst_13 [2] : vector<1x8x8xf32> to vector<1x8xf32>
    %14 = vector.shape_cast %13 : vector<1x8xf32> to vector<1x8x1xf32>
    %cst_14 = arith.constant 1.000000e+00 : f32
    %15 = vector.broadcast %cst_14 : f32 to vector<1x8x1xf32>
    %16 = arith.divf %15, %14 : vector<1x8x1xf32>
    %17 = vector.broadcast %16 : vector<1x8x1xf32> to vector<1x8x8xf32>
    %18 = arith.mulf %12, %17 : vector<1x8x8xf32>
    %19 = vector.broadcast %9 : vector<1x8x1xf32> to vector<1x8x8xf32>
    %20 = arith.subf %6, %19 : vector<1x8x8xf32>
    %21 = math.log %14 : vector<1x8x1xf32>
    %22 = vector.broadcast %21 : vector<1x8x1xf32> to vector<1x8x8xf32>
    %23 = arith.subf %20, %22 : vector<1x8x8xf32>
    %c0_15 = arith.constant 0 : index
    %c0_16 = arith.constant 0 : index
    %c0_17 = arith.constant 0 : index
    %24 = vector.load %arg8[%c0_15, %c0_16, %c0_17] : memref<1x8x8xf32, #tpu.memory_space<vmem>>, vector<1x8x8xf32>
    tpu.vector_store %arg8[%c0_15, %c0_16, %c0_17], %23 {strides = array<i32>} : memref<1x8x8xf32, #tpu.memory_space<vmem>>, vector<1x8x8xf32>,
    %c0_18 = arith.constant 0 : index
    %c0_19 = arith.constant 0 : index
    %c0_20 = arith.constant 0 : index
    %25 = vector.load %arg7[%c0_18, %c0_19, %c0_20] : memref<1x8x8xf32, #tpu.memory_space<vmem>>, vector<1x8x8xf32>
    tpu.vector_store %arg7[%c0_18, %c0_19, %c0_20], %18 {strides = array<i32>} : memref<1x8x8xf32, #tpu.memory_space<vmem>>, vector<1x8x8xf32>,
    "tpu.trace_start"() <{level = 10 : i32, message = "bqk,bkd->bqd"}> : () -> ()
    %cst_21 = arith.constant dense<0.000000e+00> : vector<1x8x32xf32>
    %26 = tpu.matmul %18, %3, %cst_21 {dimension_numbers = #tpu.dot_dimension_numbers<[2], [1], [1], [2], [0, 0, 0, 1, 1, 2], [0], [0]>} : vector<1x8x8xf32>, vector<1x8x32xf32>, vector<1x8x32xf32> -> vector<1x8x32xf32>
    "tpu.trace_stop"() : () -> ()
    %c0_22 = arith.constant 0 : index
    %c0_23 = arith.constant 0 : index
    %c0_24 = arith.constant 0 : index
    %27 = vector.load %arg6[%c0_22, %c0_23, %c0_24] : memref<1x8x32xf32, #tpu.memory_space<vmem>>, vector<1x8x32xf32>
    tpu.vector_store %arg6[%c0_22, %c0_23, %c0_24], %26 {strides = array<i32>} : memref<1x8x32xf32, #tpu.memory_space<vmem>>, vector<1x8x32xf32>,
    return
  }
  func.func @transform_0(%arg0: i32, %arg1: i32, %arg2: memref<1xf32, #tpu.memory_space<smem>>) -> (i32, i32, i32) {
    %c0_i32 = arith.constant 0 : i32
    %c0_i32_0 = arith.constant 0 : i32
    return %arg0, %arg1, %c0_i32 : i32, i32, i32
  }
  func.func @transform_1(%arg0: i32, %arg1: i32, %arg2: memref<1xf32, #tpu.memory_space<smem>>) -> (i32, i32, i32) {
    %c0_i32 = arith.constant 0 : i32
    %c0_i32_0 = arith.constant 0 : i32
    %c0_i32_1 = arith.constant 0 : i32
    return %arg0, %c0_i32, %c0_i32_0 : i32, i32, i32
  }
  func.func @transform_2(%arg0: i32, %arg1: i32, %arg2: memref<1xf32, #tpu.memory_space<smem>>) -> (i32, i32, i32) {
    %c0_i32 = arith.constant 0 : i32
    %c0_i32_0 = arith.constant 0 : i32
    %c0_i32_1 = arith.constant 0 : i32
    return %arg0, %c0_i32, %c0_i32_0 : i32, i32, i32
  }
  func.func @transform_3(%arg0: i32, %arg1: i32, %arg2: memref<1xf32, #tpu.memory_space<smem>>) -> (i32, i32, i32) {
    %c0_i32 = arith.constant 0 : i32
    %c0_i32_0 = arith.constant 0 : i32
    return %arg0, %arg1, %c0_i32 : i32, i32, i32
  }
  func.func @transform_4(%arg0: i32, %arg1: i32, %arg2: memref<1xf32, #tpu.memory_space<smem>>) -> (i32, i32, i32) {
    %c0_i32 = arith.constant 0 : i32
    %c0_i32_0 = arith.constant 0 : i32
    return %arg0, %arg1, %c0_i32 : i32, i32, i32
  }
  func.func @transform_5(%arg0: i32, %arg1: i32, %arg2: memref<1xf32, #tpu.memory_space<smem>>) -> (i32, i32, i32) {
    %c0_i32 = arith.constant 0 : i32
    %c0_i32_0 = arith.constant 0 : i32
    return %arg0, %arg1, %c0_i32 : i32, i32, i32
  }
  func.func @transform_6(%arg0: i32, %arg1: i32, %arg2: memref<1xf32, #tpu.memory_space<smem>>) -> (i32, i32, i32) {
    %c0_i32 = arith.constant 0 : i32
    %c0_i32_0 = arith.constant 0 : i32
    return %arg0, %arg1, %c0_i32 : i32, i32, i32
  }
}

</mosaic_0001>

<llo_original>
// kernel: tpu_custom_call.1
$region0: #{tpu_custom_call.1}
  #allocation0 [shape = 'u32[]', space=smem, size = 0x4, offset = 0x4, fixed_abs, tag = 'smem constant byte address 0x4 - core index']
  #allocation1 [shape = 'u32[144,128]{1,0:T(1,128)}', space=vmem, size = 0x12000, scoped, tag = 'internal scratch']
  #allocation2 [shape = 's32[1]{0}', space=sflag, size = 0x4, scoped, tag = 'scoped memory for tpu_custom_call.1']
  #allocation3 [shape = 'f32[1]{0:T(128)S(6)}', space=smem, size = 0x200, scoped, tag = 'prefetched SMEM operand 0']
  %s0 = inlined_call_operand.<no memory space> [shape: f32[1], index: 0, kind: input, shape index: {}]
  %s1 = inlined_call_operand.hbm [shape: f32[2,8,32], index: 1, kind: input, shape index: {}]
  %s2 = inlined_call_operand.hbm [shape: f32[2,8,32], index: 2, kind: input, shape index: {}]
  %s3 = inlined_call_operand.hbm [shape: f32[2,8,32], index: 3, kind: input, shape index: {}]
  %s4 = inlined_call_operand.hbm [shape: f32[2,8,32], index: 4, kind: output, shape index: {0}]
  %s5 = inlined_call_operand.hbm [shape: f32[2,8,8], index: 5, kind: output, shape index: {1}]
  %s6 = inlined_call_operand.hbm [shape: f32[2,8,8], index: 6, kind: output, shape index: {2}]
  %s7 = inlined_call_operand.hbm [shape: f32[2,8,8], index: 7, kind: output, shape index: {3}]
  %8 = xla_tuple %s4, %s5, %s6, %s7
  %s9 = sld [smem:[#allocation0]]
  $region81: #{tpu_custom_call.1} parent=0
    _
  %s11 = ssub.s32 1, %s9
  %s12 = scalar_select 0, %s11, %s9
  %13 = sst [smem:[#allocation3]] %s0
  $region1: #{tpu_custom_call.1} parent=0
    #allocation4 [shape = 'u8[8192]{0}', space=vmem, size = 0x2000, scoped, tag = 'input window, operand 1']
    #allocation5 [shape = 's32[2]{0}', space=sflag, size = 0x8, scoped, tag = 'scoped memory for tpu_custom_call.1']
    #allocation6 [shape = 's32[2]{0}', space=sflag, size = 0x8, scoped, tag = 'scoped memory for tpu_custom_call.1']
    #allocation7 [shape = 'u8[8192]{0}', space=vmem, size = 0x2000, scoped, tag = 'input window, operand 2']
    #allocation8 [shape = 's32[2]{0}', space=sflag, size = 0x8, scoped, tag = 'scoped memory for tpu_custom_call.1']
    #allocation9 [shape = 'u8[8192]{0}', space=vmem, size = 0x2000, scoped, tag = 'input window, operand 3']
    #allocation10 [shape = 'u8[8192]{0}', space=vmem, size = 0x2000, scoped, tag = 'output window, operand 0']
    #allocation11 [shape = 'u8[8192]{0}', space=vmem, size = 0x2000, scoped, tag = 'output window, operand 1']
    #allocation12 [shape = 's32[2]{0}', space=sflag, size = 0x8, scoped, tag = 'scoped memory for tpu_custom_call.1']
    #allocation13 [shape = 'u8[8192]{0}', space=vmem, size = 0x2000, scoped, tag = 'output window, operand 2']
    #allocation14 [shape = 'u8[8192]{0}', space=vmem, size = 0x2000, scoped, tag = 'output window, operand 3']
    #allocation15 [shape = 's32[2]{0}', space=sflag, size = 0x8, scoped, tag = 'scoped memory for tpu_custom_call.1']
    %14 = vsyncpa [#allocation5], 0
    %s15 = scalar_lea.sflag [#allocation5], 1
    %16 = vsyncpa %s15, 0
    %17 = vsyncpa [#allocation8], 0
    %s18 = scalar_lea.sflag [#allocation8], 1
    %19 = vsyncpa %s18, 0
    %20 = vsyncpa [#allocation6], 0
    %s21 = scalar_lea.sflag [#allocation6], 1
    %22 = vsyncpa %s21, 0
    %23 = vsyncpa [#allocation12], 0
    %s24 = scalar_lea.sflag [#allocation12], 1
    %25 = vsyncpa %s24, 0
    %26 = vsyncpa [#allocation15], 0
    %s27 = scalar_lea.sflag [#allocation15], 1
    %28 = vsyncpa %s27, 0
    loop: start=0, step=1, limit=4
    $region2: #{tpu_custom_call.1} parent=1 // loop_pre_header
      _
    $region3: #{tpu_custom_call.1} parent=1 // loop_header
      %s30 = sphi 0, %s34
      %p31 = scmp.ge.s32.totalorder %s30, 4
      %s37 = sphi 0, %s49
      %s38 = sphi 0, %s45
      %s39 = sphi 0, %s37
      %s40 = sphi 0, %s38
      %s41 = sphi 0, %s39
      %s42 = sphi 0, %s40
      %s54 = sphi 0, %s56
      %s57 = sphi 0, %s54
      %s58 = sphi 0, %s57
      %s74 = sphi 0, %s58
      %s80 = sphi 0, %s82
      %s83 = sphi 0, %s80
      %s84 = sphi 0, %s83
      %s100 = sphi 0, %s84
      %s106 = sphi 0, %s108
      %s109 = sphi 0, %s106
      %s110 = sphi 0, %s109
      %s126 = sphi 0, %s110
      %s134 = sphi 0, %s136
      %s137 = sphi 0, %s134
      %s138 = sphi 0, %s137
      %s154 = sphi 0, %s138
      %s162 = sphi 0, %s164
      %s165 = sphi 0, %s162
      %s166 = sphi 0, %s165
      %s182 = sphi 0, %s166
      %s190 = sphi 0, %s192
      %s193 = sphi 0, %s190
      %s194 = sphi 0, %s193
      %s210 = sphi 0, %s194
      %s218 = sphi 0, %s220
      %s221 = sphi 0, %s218
      %s222 = sphi 0, %s221
      %s238 = sphi 0, %s222
    $region4: #{tpu_custom_call.1} parent=1 // loop_header_branch
      %33 = sbr.rel (%p31) target = $region8
    $region5: #{tpu_custom_call.1} parent=1 // loop_body
      %s35 = ssub.s32 %s30, 1
      %s36 = ssub.s32 %s30, 2
      %s43 = sadd.s32 1, %s38
      %p44 = scmp.ge.s32.totalorder %s43, 1
      %s45 = scalar_select %p44, 0, %s43
      %s46 = sadd.s32 1, %s37
      %s47 = scalar_select %p44, %s46, %s37
      %p48 = scmp.ge.s32.totalorder %s47, 2
      %s49 = scalar_select %p48, 0, %s47
      %s50 = ssub.s32 %s37, %s49
      %s51 = ssub.s32 %s38, %s45
      %s52 = sor.u32 %s50, %s51
      %p53 = scmp.eq.s32.totalorder %s52, 0
      %s55 = sadd.s32 %s54, 1
      %s56 = scalar_select %p53, %s54, %s55
      %p59 = pneg %p53
      %p60 = scmp.eq.s32.totalorder %s30, 1
      %p61 = por %p59, %p60
      %p62 = scmp.ne.s32.totalorder %s54, %s57
      %p63 = scmp.eq.s32.totalorder %s30, 0
      %p64 = por %p62, %p63
      %p65 = scmp.ne.s32.totalorder %s54, %s57
      %p66 = scmp.eq.s32.totalorder %s35, 1
      %p67 = por %p65, %p66
      %p68 = scmp.ne.s32.totalorder %s57, %s58
      %p69 = scmp.eq.s32.totalorder %s35, 0
      %p70 = por %p68, %p69
      %p71 = scmp.ne.s32.totalorder %s57, %s58
      %p72 = scmp.eq.s32.totalorder %s36, 1
      %p73 = por %p71, %p72
      %p75 = scmp.ne.s32.totalorder %s58, %s74
      %p76 = scmp.eq.s32.totalorder %s36, 0
      %p77 = por %p75, %p76
      %s78 = ssub.s32 %s37, %s49
      %p79 = scmp.eq.s32.totalorder %s78, 0
      %s81 = sadd.s32 %s80, 1
      %s82 = scalar_select %p79, %s80, %s81
      %p85 = pneg %p79
      %p86 = scmp.eq.s32.totalorder %s30, 1
      %p87 = por %p85, %p86
      %p88 = scmp.ne.s32.totalorder %s80, %s83
      %p89 = scmp.eq.s32.totalorder %s30, 0
      %p90 = por %p88, %p89
      %p91 = scmp.ne.s32.totalorder %s80, %s83
      %p92 = scmp.eq.s32.totalorder %s35, 1
      %p93 = por %p91, %p92
      %p94 = scmp.ne.s32.totalorder %s83, %s84
      %p95 = scmp.eq.s32.totalorder %s35, 0
      %p96 = por %p94, %p95
      %p97 = scmp.ne.s32.totalorder %s83, %s84
      %p98 = scmp.eq.s32.totalorder %s36, 1
      %p99 = por %p97, %p98
      %p101 = scmp.ne.s32.totalorder %s84, %s100
      %p102 = scmp.eq.s32.totalorder %s36, 0
      %p103 = por %p101, %p102
      %s104 = ssub.s32 %s37, %s49
      %p105 = scmp.eq.s32.totalorder %s104, 0
      %s107 = sadd.s32 %s106, 1
      %s108 = scalar_select %p105, %s106, %s107
      %p111 = pneg %p105
      %p112 = scmp.eq.s32.totalorder %s30, 1
      %p113 = por %p111, %p112
      %p114 = scmp.ne.s32.totalorder %s106, %s109
      %p115 = scmp.eq.s32.totalorder %s30, 0
      %p116 = por %p114, %p115
      %p117 = scmp.ne.s32.totalorder %s106, %s109
      %p118 = scmp.eq.s32.totalorder %s35, 1
      %p119 = por %p117, %p118
      %p120 = scmp.ne.s32.totalorder %s109, %s110
      %p121 = scmp.eq.s32.totalorder %s35, 0
      %p122 = por %p120, %p121
      %p123 = scmp.ne.s32.totalorder %s109, %s110
      %p124 = scmp.eq.s32.totalorder %s36, 1
      %p125 = por %p123, %p124
      %p127 = scmp.ne.s32.totalorder %s110, %s126
      %p128 = scmp.eq.s32.totalorder %s36, 0
      %p129 = por %p127, %p128
      %s130 = ssub.s32 %s37, %s49
      %s131 = ssub.s32 %s38, %s45
      %s132 = sor.u32 %s130, %s131
      %p133 = scmp.eq.s32.totalorder %s132, 0
      %s135 = sadd.s32 %s134, 1
      %s136 = scalar_select %p133, %s134, %s135
      %p139 = pneg %p133
      %p140 = scmp.eq.s32.totalorder %s30, 1
      %p141 = por %p139, %p140
      %p142 = scmp.ne.s32.totalorder %s134, %s137
      %p143 = scmp.eq.s32.totalorder %s30, 0
      %p144 = por %p142, %p143
      %p145 = scmp.ne.s32.totalorder %s134, %s137
      %p146 = scmp.eq.s32.totalorder %s35, 1
      %p147 = por %p145, %p146
      %p148 = scmp.ne.s32.totalorder %s137, %s138
      %p149 = scmp.eq.s32.totalorder %s35, 0
      %p150 = por %p148, %p149
      %p151 = scmp.ne.s32.totalorder %s137, %s138
      %p152 = scmp.eq.s32.totalorder %s36, 1
      %p153 = por %p151, %p152
      %p155 = scmp.ne.s32.totalorder %s138, %s154
      %p156 = scmp.eq.s32.totalorder %s36, 0
      %p157 = por %p155, %p156
      %s158 = ssub.s32 %s37, %s49
      %s159 = ssub.s32 %s38, %s45
      %s160 = sor.u32 %s158, %s159
      %p161 = scmp.eq.s32.totalorder %s160, 0
      %s163 = sadd.s32 %s162, 1
      %s164 = scalar_select %p161, %s162, %s163
      %p167 = pneg %p161
      %p168 = scmp.eq.s32.totalorder %s30, 1
      %p169 = por %p167, %p168
      %p170 = scmp.ne.s32.totalorder %s162, %s165
      %p171 = scmp.eq.s32.totalorder %s30, 0
      %p172 = por %p170, %p171
      %p173 = scmp.ne.s32.totalorder %s162, %s165
      %p174 = scmp.eq.s32.totalorder %s35, 1
      %p175 = por %p173, %p174
      %p176 = scmp.ne.s32.totalorder %s165, %s166
      %p177 = scmp.eq.s32.totalorder %s35, 0
      %p178 = por %p176, %p177
      %p179 = scmp.ne.s32.totalorder %s165, %s166
      %p180 = scmp.eq.s32.totalorder %s36, 1
      %p181 = por %p179, %p180
      %p183 = scmp.ne.s32.totalorder %s166, %s182
      %p184 = scmp.eq.s32.totalorder %s36, 0
      %p185 = por %p183, %p184
      %s186 = ssub.s32 %s37, %s49
      %s187 = ssub.s32 %s38, %s45
      %s188 = sor.u32 %s186, %s187
      %p189 = scmp.eq.s32.totalorder %s188, 0
      %s191 = sadd.s32 %s190, 1
      %s192 = scalar_select %p189, %s190, %s191
      %p195 = pneg %p189
      %p196 = scmp.eq.s32.totalorder %s30, 1
      %p197 = por %p195, %p196
      %p198 = scmp.ne.s32.totalorder %s190, %s193
      %p199 = scmp.eq.s32.totalorder %s30, 0
      %p200 = por %p198, %p199
      %p201 = scmp.ne.s32.totalorder %s190, %s193
      %p202 = scmp.eq.s32.totalorder %s35, 1
      %p203 = por %p201, %p202
      %p204 = scmp.ne.s32.totalorder %s193, %s194
      %p205 = scmp.eq.s32.totalorder %s35, 0
      %p206 = por %p204, %p205
      %p207 = scmp.ne.s32.totalorder %s193, %s194
      %p208 = scmp.eq.s32.totalorder %s36, 1
      %p209 = por %p207, %p208
      %p211 = scmp.ne.s32.totalorder %s194, %s210
      %p212 = scmp.eq.s32.totalorder %s36, 0
      %p213 = por %p211, %p212
      %s214 = ssub.s32 %s37, %s49
      %s215 = ssub.s32 %s38, %s45
      %s216 = sor.u32 %s214, %s215
      %p217 = scmp.eq.s32.totalorder %s216, 0
      %s219 = sadd.s32 %s218, 1
      %s220 = scalar_select %p217, %s218, %s219
      %p223 = pneg %p217
      %p224 = scmp.eq.s32.totalorder %s30, 1
      %p225 = por %p223, %p224
      %p226 = scmp.ne.s32.totalorder %s218, %s221
      %p227 = scmp.eq.s32.totalorder %s30, 0
      %p228 = por %p226, %p227
      %p229 = scmp.ne.s32.totalorder %s218, %s221
      %p230 = scmp.eq.s32.totalorder %s35, 1
      %p231 = por %p229, %p230
      %p232 = scmp.ne.s32.totalorder %s221, %s222
      %p233 = scmp.eq.s32.totalorder %s35, 0
      %p234 = por %p232, %p233
      %p235 = scmp.ne.s32.totalorder %s221, %s222
      %p236 = scmp.eq.s32.totalorder %s36, 1
      %p237 = por %p235, %p236
      %p239 = scmp.ne.s32.totalorder %s222, %s238
      %p240 = scmp.eq.s32.totalorder %s36, 0
      %p241 = por %p239, %p240
      %p242 = scmp.le.s32.totalorder 1, %s30
      %p243 = scmp.lt.s32.totalorder %s30, 3
      %p244 = pnand %p242, %p243
      %p245 = pneg %p244
      // Predicated region
      $region9: #{tpu_custom_call.1} parent=5 // pred_check
        _
      $region10: #{tpu_custom_call.1} parent=5 // pred_check_branch
        %247 = sbr.rel (%p244) target = $region12
      $region11: #{tpu_custom_call.1} parent=5 // pred_region
        %s248 = ssub.s32 %s30, 1
      $region12: #{tpu_custom_call.1} parent=5 // pred_fallthru
        _
      %p249 = scmp.lt.s32.totalorder %s30, 2
      // Predicated region
      $region13: #{tpu_custom_call.1} parent=5 // pred_check
        %p250 = pneg %p249
      $region14: #{tpu_custom_call.1} parent=5 // pred_check_branch
        %252 = sbr.rel (%p250) target = $region16
      $region15: #{tpu_custom_call.1} parent=5 // pred_region
        // Predicated region
        $region17: #{tpu_custom_call.1} parent=15 // pred_check
          %p253 = pneg %p64
        $region18: #{tpu_custom_call.1} parent=15 // pred_check_branch
          %255 = sbr.rel (%p253) target = $region20
        $region19: #{tpu_custom_call.1} parent=15 // pred_region
          %s256 = sand.u32 %s54, 1
          %s257 = scalar_lea.sflag [#allocation5], %s256
          %s258 = sand.u32 %s54, 1
          %s259 = smul.addr %s258, 8
          %s260 = scalar_lea.vmem [#allocation4], %s259
          %s262 = ssub.s32 128, 128
          %263 = vsyncadd %s257, %s262
          %s264 = sadd.s32 %s38, %s37
          %s265 = smul.addr %s264, 128
          %s266 = scalar_lea.hbm %s1, %s265
          %s268 = sshll.u32 %s260, 4
          %s269 = int_to_ptr.vmem [resolvable:$true] %s268
          %271 = dma.hbm_to_vmem [thread:$0]  %s266, 128, %s269, %s257
        $region20: #{tpu_custom_call.1} parent=15 // pred_fallthru
          _
        // Predicated region
        $region21: #{tpu_custom_call.1} parent=15 // pred_check
          %p272 = pneg %p90
        $region22: #{tpu_custom_call.1} parent=15 // pred_check_branch
          %274 = sbr.rel (%p272) target = $region24
        $region23: #{tpu_custom_call.1} parent=15 // pred_region
          %s275 = sand.u32 %s30, 1
          %s276 = scalar_lea.sflag [#allocation8], %s275
          %s277 = sand.u32 %s80, 1
          %s278 = smul.addr %s277, 8
          %s279 = scalar_lea.vmem [#allocation7], %s278
          %s281 = ssub.s32 128, 128
          %282 = vsyncadd %s276, %s281
          %s283 = smul.addr %s37, 128
          %s284 = scalar_lea.hbm %s2, %s283
          %s286 = sshll.u32 %s279, 4
          %s287 = int_to_ptr.vmem [resolvable:$true] %s286
          %289 = dma.hbm_to_vmem [thread:$0]  %s284, 128, %s287, %s276
        $region24: #{tpu_custom_call.1} parent=15 // pred_fallthru
          _
        // Predicated region
        $region25: #{tpu_custom_call.1} parent=15 // pred_check
          %p290 = pneg %p116
        $region26: #{tpu_custom_call.1} parent=15 // pred_check_branch
          %292 = sbr.rel (%p290) target = $region28
        $region27: #{tpu_custom_call.1} parent=15 // pred_region
          %s293 = sand.u32 %s30, 1
          %s294 = scalar_lea.sflag [#allocation8], %s293
          %s295 = sand.u32 %s106, 1
          %s296 = smul.addr %s295, 8
          %s297 = scalar_lea.vmem [#allocation9], %s296
          %s299 = ssub.s32 128, 128
          %300 = vsyncadd %s294, %s299
          %s301 = smul.addr %s37, 128
          %s302 = scalar_lea.hbm %s3, %s301
          %s304 = sshll.u32 %s297, 4
          %s305 = int_to_ptr.vmem [resolvable:$true] %s304
          %307 = dma.hbm_to_vmem [thread:$0]  %s302, 128, %s305, %s294
        $region28: #{tpu_custom_call.1} parent=15 // pred_fallthru
          _
      $region16: #{tpu_custom_call.1} parent=5 // pred_fallthru
        _
      %p308 = scmp.le.s32.totalorder 1, %s30
      %p309 = scmp.lt.s32.totalorder %s30, 3
      %p310 = pnand %p308, %p309
      %p311 = pneg %p310
      // Predicated region
      $region29: #{tpu_custom_call.1} parent=5 // pred_check
        _
      $region30: #{tpu_custom_call.1} parent=5 // pred_check_branch
        %313 = sbr.rel (%p310) target = $region32
      $region31: #{tpu_custom_call.1} parent=5 // pred_region
        %s314 = ssub.s32 %s30, 1
        %s315 = sand.u32 %s57, 1
        %s316 = scalar_lea.sflag [#allocation5], %s315
        %s317 = sand.u32 %s57, 1
        %s318 = smul.addr %s317, 8
        %s319 = scalar_lea.vmem [#allocation4], %s318
        // Predicated region
        $region33: #{tpu_custom_call.1} parent=31 // pred_check
          %p320 = pneg %p70
        $region34: #{tpu_custom_call.1} parent=31 // pred_check_branch
          %322 = sbr.rel (%p320) target = $region36
        $region35: #{tpu_custom_call.1} parent=31 // pred_region
          %323 = dma.done %s316, 128
        $region36: #{tpu_custom_call.1} parent=31 // pred_fallthru
          _
        %s324 = sand.u32 %s35, 1
        %s325 = scalar_lea.sflag [#allocation8], %s324
        %s326 = sand.u32 %s83, 1
        %s327 = smul.addr %s326, 8
        %s328 = scalar_lea.vmem [#allocation7], %s327
        // Predicated region
        $region37: #{tpu_custom_call.1} parent=31 // pred_check
          %p329 = pneg %p96
        $region38: #{tpu_custom_call.1} parent=31 // pred_check_branch
          %331 = sbr.rel (%p329) target = $region40
        $region39: #{tpu_custom_call.1} parent=31 // pred_region
          %332 = dma.done %s325, 128
        $region40: #{tpu_custom_call.1} parent=31 // pred_fallthru
          _
        %s333 = sand.u32 %s35, 1
        %s334 = scalar_lea.sflag [#allocation8], %s333
        %s335 = sand.u32 %s109, 1
        %s336 = smul.addr %s335, 8
        %s337 = scalar_lea.vmem [#allocation9], %s336
        // Predicated region
        $region41: #{tpu_custom_call.1} parent=31 // pred_check
          %p338 = pneg %p122
        $region42: #{tpu_custom_call.1} parent=31 // pred_check_branch
          %340 = sbr.rel (%p338) target = $region44
        $region43: #{tpu_custom_call.1} parent=31 // pred_region
          %341 = dma.done %s334, 128
        $region44: #{tpu_custom_call.1} parent=31 // pred_fallthru
          _
        %s342 = sand.u32 %s57, 1
        %s343 = scalar_lea.sflag [#allocation5], %s342
        %s344 = sand.u32 %s57, 1
        %s345 = smul.addr %s344, 8
        %s346 = scalar_lea.vmem [#allocation4], %s345
        %p347 = pneg %p70
        %p348 = pneg %p67
        %s349 = sand.u32 %s35, 1
        %s350 = scalar_lea.sflag [#allocation8], %s349
        %s351 = sand.u32 %s83, 1
        %s352 = smul.addr %s351, 8
        %s353 = scalar_lea.vmem [#allocation7], %s352
        %p354 = pneg %p96
        %p355 = pneg %p93
        %s356 = sand.u32 %s35, 1
        %s357 = scalar_lea.sflag [#allocation8], %s356
        %s358 = sand.u32 %s109, 1
        %s359 = smul.addr %s358, 8
        %s360 = scalar_lea.vmem [#allocation9], %s359
        %p361 = pneg %p122
        %p362 = pneg %p119
        %p363 = pneg %p150
        %p364 = pneg %p147
        %s365 = sand.u32 %s137, 1
        %s366 = scalar_lea.sflag [#allocation6], %s365
        %s367 = sand.u32 %s137, 1
        %s368 = smul.addr %s367, 8
        %s369 = scalar_lea.vmem [#allocation10], %s368
        %p370 = pneg %p178
        %p371 = pneg %p175
        %s372 = sand.u32 %s35, 1
        %s373 = scalar_lea.sflag [#allocation12], %s372
        %s374 = sand.u32 %s165, 1
        %s375 = smul.addr %s374, 8
        %s376 = scalar_lea.vmem [#allocation11], %s375
        %p377 = pneg %p206
        %p378 = pneg %p203
        %s379 = sand.u32 %s35, 1
        %s380 = scalar_lea.sflag [#allocation12], %s379
        %s381 = sand.u32 %s193, 1
        %s382 = smul.addr %s381, 8
        %s383 = scalar_lea.vmem [#allocation13], %s382
        %p384 = pneg %p234
        %p385 = pneg %p231
        %s386 = sand.u32 %s221, 1
        %s387 = scalar_lea.sflag [#allocation15], %s386
        %s388 = sand.u32 %s221, 1
        %s389 = smul.addr %s388, 8
        %s390 = scalar_lea.vmem [#allocation14], %s389
        %s391 = sld [smem:[#allocation3]]
        %v392 = vld [vmem:[%s319] sm:$0xff]
        %v393 = vld [vmem:[%s328] sm:$0xff]
        %v394 = vld [vmem:[%s337] sm:$0xff]
        %v395 = vstv %s391
        %v396 = vmul.f32 %v392, %v395
        %vm397 = vcmask 261120
        %v399 = vsel %vm397, %v396, 0
        %v402 = vsel %vm397, %v393, 0
        %404 = vmatprep.subr.mxu0 0.0
        %405 = vmatpush1.xpose.msra.mxu0 %v402
        %406 = vmatprep.subr.mxu0 0.0
        %407 = vmatpush1.xpose.msra.mxu0 0.0
        %408 = vmatprep.subr.mxu0 0.0
        %409 = vmatpush1.xpose.msra.mxu0 0.0
        %410 = vmatprep.subr.mxu0 0.0
        %411 = vmatpush1.xpose.msra.mxu0 0.0
        %412 = vmatprep.subr.mxu0 0.0
        %413 = vmatpush1.xpose.msra.mxu0 0.0
        %414 = vmatprep.subr.mxu0 0.0
        %415 = vmatpush1.xpose.msra.mxu0 0.0
        %416 = vmatprep.subr.mxu0 0.0
        %417 = vmatpush1.xpose.msra.mxu0 0.0
        %418 = vmatprep.subr.mxu0 0.0
        %419 = vmatpush1.xpose.msra.mxu0 0.0
        %420 = vmatprep.subr.mxu0 0.0
        %421 = vmatpush1.xpose.msra.mxu0 0.0
        %422 = vmatprep.subr.mxu0 0.0
        %423 = vmatpush1.xpose.msra.mxu0 0.0
        %424 = vmatprep.subr.mxu0 0.0
        %425 = vmatpush1.xpose.msra.mxu0 0.0
        %426 = vmatprep.subr.mxu0 0.0
        %427 = vmatpush1.xpose.msra.mxu0 0.0
        %428 = vmatprep.subr.mxu0 0.0
        %429 = vmatpush1.xpose.msra.mxu0 0.0
        %430 = vmatprep.subr.mxu0 0.0
        %431 = vmatpush1.xpose.msra.mxu0 0.0
        %432 = vmatprep.subr.mxu0 0.0
        %433 = vmatpush1.xpose.msra.mxu0 0.0
        %434 = vmatprep.subr.mxu0 0.0
        %435 = vmatpush1.xpose.msra.mxu0 0.0
        %436 = vmatprep.subr.mxu0 0.0
        %437 = vmatpush1.xpose.msra.mxu0 0.0
        %438 = vmatprep.subr.mxu0 0.0
        %439 = vmatpush1.xpose.msra.mxu0 0.0
        %440 = vmatprep.subr.mxu0 0.0
        %441 = vmatpush1.xpose.msra.mxu0 0.0
        %442 = vmatprep.subr.mxu0 0.0
        %443 = vmatpush1.xpose.msra.mxu0 0.0
        %444 = vmatprep.subr.mxu0 0.0
        %445 = vmatpush1.xpose.msra.mxu0 0.0
        %446 = vmatprep.subr.mxu0 0.0
        %447 = vmatpush1.xpose.msra.mxu0 0.0
        %448 = vmatprep.subr.mxu0 0.0
        %449 = vmatpush1.xpose.msra.mxu0 0.0
        %450 = vmatprep.subr.mxu0 0.0
        %451 = vmatpush1.xpose.msra.mxu0 0.0
        %452 = vmatprep.subr.mxu0 0.0
        %453 = vmatpush1.xpose.msra.mxu0 0.0
        %454 = vmatprep.subr.mxu0 0.0
        %455 = vmatpush1.xpose.msra.mxu0 0.0
        %456 = vmatprep.subr.mxu0 0.0
        %457 = vmatpush1.xpose.msra.mxu0 0.0
        %458 = vmatprep.subr.mxu0 0.0
        %459 = vmatpush1.xpose.msra.mxu0 0.0
        %460 = vmatprep.subr.mxu0 0.0
        %461 = vmatpush1.xpose.msra.mxu0 0.0
        %462 = vmatprep.subr.mxu0 0.0
        %463 = vmatpush1.xpose.msra.mxu0 0.0
        %464 = vmatprep.subr.mxu0 0.0
        %465 = vmatpush1.xpose.msra.mxu0 0.0
        %466 = vmatprep.subr.mxu0 0.0
        %467 = vmatpush1.xpose.msra.mxu0 0.0
        %468 = vmatprep.mubr.f32.mxu0 0.0
        %469 = vmatmul.mubr.f32.gmra.mrb[0].mxu0 %v399
        %v470 = vpop.f32.mrb[0].mxu0
        %v471 = vadd.f32 0.0, %v470
        %v472 = vpop.f32.mrb[0].mxu0
        %473 = vdwg.mxu0
        %vm474 = vcmask 64512
        %475 = vst.msk [vmem:[%s390] sm:$0xff] %vm474, %v471
        %v476 = vsel %vm474, %v471, -inf
        %477 = vmax.xlane.f32.xlu0 %v476
        %v478 = vpop.xlane.xlu0 %477
        %v479 = vsub.f32 %v471, %v478
        %v480 = vmul.f32 %v479, 1.442695
        %v481 = vpow.pop %v480
        %v482 = vsel %vm474, %v481, 0.0
        %483 = vadd.xlane.f32.xlu0 %v482
        %v484 = vpop.xlane.xlu0 %483
        %v485 = vrcp.pop %v484
        %v486 = vmul.f32 1.0, %v485
        %v487 = vmul.f32 %v481, %v486
        %v488 = vlog2.pop %v484
        %v489 = vmul.f32 %v488, 0.6931472
        %v490 = vsub.f32 %v479, %v489
        %491 = vst.msk [vmem:[%s383] sm:$0xff] %vm474, %v490
        %492 = vst.msk [vmem:[%s376] sm:$0xff] %vm474, %v487
        %v494 = vsel %vm474, %v487, 0
        %496 = vmatprep.subr.mxu0 0.0
        %497 = vmatpush1.msra.mxu0 %v394
        %498 = vmatprep.subr.mxu0 0.0
        %499 = vmatpush1.msra.mxu0 0.0
        %500 = vmatprep.subr.mxu0 0.0
        %501 = vmatpush1.msra.mxu0 0.0
        %502 = vmatprep.subr.mxu0 0.0
        %503 = vmatpush1.msra.mxu0 0.0
        %504 = vmatprep.subr.mxu0 0.0
        %505 = vmatpush1.msra.mxu0 0.0
        %506 = vmatprep.subr.mxu0 0.0
        %507 = vmatpush1.msra.mxu0 0.0
        %508 = vmatprep.subr.mxu0 0.0
        %509 = vmatpush1.msra.mxu0 0.0
        %510 = vmatprep.subr.mxu0 0.0
        %511 = vmatpush1.msra.mxu0 0.0
        %512 = vmatprep.subr.mxu0 0.0
        %513 = vmatpush1.msra.mxu0 0.0
        %514 = vmatprep.subr.mxu0 0.0
        %515 = vmatpush1.msra.mxu0 0.0
        %516 = vmatprep.subr.mxu0 0.0
        %517 = vmatpush1.msra.mxu0 0.0
        %518 = vmatprep.subr.mxu0 0.0
        %519 = vmatpush1.msra.mxu0 0.0
        %520 = vmatprep.subr.mxu0 0.0
        %521 = vmatpush1.msra.mxu0 0.0
        %522 = vmatprep.subr.mxu0 0.0
        %523 = vmatpush1.msra.mxu0 0.0
        %524 = vmatprep.subr.mxu0 0.0
        %525 = vmatpush1.msra.mxu0 0.0
        %526 = vmatprep.subr.mxu0 0.0
        %527 = vmatpush1.msra.mxu0 0.0
        %528 = vmatprep.subr.mxu0 0.0
        %529 = vmatpush1.msra.mxu0 0.0
        %530 = vmatprep.subr.mxu0 0.0
        %531 = vmatpush1.msra.mxu0 0.0
        %532 = vmatprep.subr.mxu0 0.0
        %533 = vmatpush1.msra.mxu0 0.0
        %534 = vmatprep.subr.mxu0 0.0
        %535 = vmatpush1.msra.mxu0 0.0
        %536 = vmatprep.subr.mxu0 0.0
        %537 = vmatpush1.msra.mxu0 0.0
        %538 = vmatprep.subr.mxu0 0.0
        %539 = vmatpush1.msra.mxu0 0.0
        %540 = vmatprep.subr.mxu0 0.0
        %541 = vmatpush1.msra.mxu0 0.0
        %542 = vmatprep.subr.mxu0 0.0
        %543 = vmatpush1.msra.mxu0 0.0
        %544 = vmatprep.subr.mxu0 0.0
        %545 = vmatpush1.msra.mxu0 0.0
        %546 = vmatprep.subr.mxu0 0.0
        %547 = vmatpush1.msra.mxu0 0.0
        %548 = vmatprep.subr.mxu0 0.0
        %549 = vmatpush1.msra.mxu0 0.0
        %550 = vmatprep.subr.mxu0 0.0
        %551 = vmatpush1.msra.mxu0 0.0
        %552 = vmatprep.subr.mxu0 0.0
        %553 = vmatpush1.msra.mxu0 0.0
        %554 = vmatprep.subr.mxu0 0.0
        %555 = vmatpush1.msra.mxu0 0.0
        %556 = vmatprep.subr.mxu0 0.0
        %557 = vmatpush1.msra.mxu0 0.0
        %558 = vmatprep.subr.mxu0 0.0
        %559 = vmatpush1.msra.mxu0 0.0
        %560 = vmatprep.mubr.f32.mxu0 0.0
        %561 = vmatmul.mubr.f32.gmra.mrb[0].mxu0 %v494
        %v562 = vpop.f32.mrb[0].mxu0
        %v563 = vadd.f32 0.0, %v562
        %v564 = vpop.f32.mrb[0].mxu0
        %565 = vdwg.mxu0
        %566 = vst.msk [vmem:[%s369] sm:$0xff] %vm397, %v563
        %s567 = sand.u32 %s137, 1
        %s568 = scalar_lea.sflag [#allocation6], %s567
        %s569 = sand.u32 %s137, 1
        %s570 = smul.addr %s569, 8
        %s571 = scalar_lea.vmem [#allocation10], %s570
        %s572 = sand.u32 %s35, 1
        %s573 = scalar_lea.sflag [#allocation12], %s572
        %s574 = sand.u32 %s165, 1
        %s575 = smul.addr %s574, 8
        %s576 = scalar_lea.vmem [#allocation11], %s575
        %s577 = sand.u32 %s35, 1
        %s578 = scalar_lea.sflag [#allocation12], %s577
        %s579 = sand.u32 %s193, 1
        %s580 = smul.addr %s579, 8
        %s581 = scalar_lea.vmem [#allocation13], %s580
        %s582 = sand.u32 %s221, 1
        %s583 = scalar_lea.sflag [#allocation15], %s582
        %s584 = sand.u32 %s221, 1
        %s585 = smul.addr %s584, 8
        %s586 = scalar_lea.vmem [#allocation14], %s585
        // Predicated region
        $region45: #{tpu_custom_call.1} parent=31 // pred_check
          %p587 = pneg %p147
        $region46: #{tpu_custom_call.1} parent=31 // pred_check_branch
          %589 = sbr.rel (%p587) target = $region48
        $region47: #{tpu_custom_call.1} parent=31 // pred_region
          %s591 = ssub.s32 128, 128
          %592 = vsyncadd %s568, %s591
          %s593 = sadd.s32 %s40, %s39
          %s594 = smul.addr %s593, 128
          %s595 = scalar_lea.hbm %s4, %s594
          %s597 = sshll.u32 %s571, 4
          %s598 = int_to_ptr.vmem [resolvable:$true] %s597
          %600 = dma.vmem_to_hbm [thread:$0]  %s598, 128, %s595, %s568
        $region48: #{tpu_custom_call.1} parent=31 // pred_fallthru
          _
        // Predicated region
        $region49: #{tpu_custom_call.1} parent=31 // pred_check
          %p601 = pneg %p175
        $region50: #{tpu_custom_call.1} parent=31 // pred_check_branch
          %603 = sbr.rel (%p601) target = $region52
        $region51: #{tpu_custom_call.1} parent=31 // pred_region
          %s605 = ssub.s32 128, 128
          %606 = vsyncadd %s573, %s605
          %s607 = sadd.s32 %s40, %s39
          %s608 = smul.addr %s607, 128
          %s609 = scalar_lea.hbm %s5, %s608
          %s611 = sshll.u32 %s576, 4
          %s612 = int_to_ptr.vmem [resolvable:$true] %s611
          %614 = dma.vmem_to_hbm [thread:$0]  %s612, 128, %s609, %s573
        $region52: #{tpu_custom_call.1} parent=31 // pred_fallthru
          _
        // Predicated region
        $region53: #{tpu_custom_call.1} parent=31 // pred_check
          %p615 = pneg %p203
        $region54: #{tpu_custom_call.1} parent=31 // pred_check_branch
          %617 = sbr.rel (%p615) target = $region56
        $region55: #{tpu_custom_call.1} parent=31 // pred_region
          %s619 = ssub.s32 128, 128
          %620 = vsyncadd %s578, %s619
          %s621 = sadd.s32 %s40, %s39
          %s622 = smul.addr %s621, 128
          %s623 = scalar_lea.hbm %s6, %s622
          %s625 = sshll.u32 %s581, 4
          %s626 = int_to_ptr.vmem [resolvable:$true] %s625
          %628 = dma.vmem_to_hbm [thread:$0]  %s626, 128, %s623, %s578
        $region56: #{tpu_custom_call.1} parent=31 // pred_fallthru
          _
        // Predicated region
        $region57: #{tpu_custom_call.1} parent=31 // pred_check
          %p629 = pneg %p231
        $region58: #{tpu_custom_call.1} parent=31 // pred_check_branch
          %631 = sbr.rel (%p629) target = $region60
        $region59: #{tpu_custom_call.1} parent=31 // pred_region
          %s633 = ssub.s32 128, 128
          %634 = vsyncadd %s583, %s633
          %s635 = sadd.s32 %s40, %s39
          %s636 = smul.addr %s635, 128
          %s637 = scalar_lea.hbm %s7, %s636
          %s639 = sshll.u32 %s586, 4
          %s640 = int_to_ptr.vmem [resolvable:$true] %s639
          %642 = dma.vmem_to_hbm [thread:$0]  %s640, 128, %s637, %s583
        $region60: #{tpu_custom_call.1} parent=31 // pred_fallthru
          _
      $region32: #{tpu_custom_call.1} parent=5 // pred_fallthru
        _
      %p643 = scmp.le.s32.totalorder 2, %s30
      // Predicated region
      $region61: #{tpu_custom_call.1} parent=5 // pred_check
        %p644 = pneg %p643
      $region62: #{tpu_custom_call.1} parent=5 // pred_check_branch
        %646 = sbr.rel (%p644) target = $region64
      $region63: #{tpu_custom_call.1} parent=5 // pred_region
        %s647 = ssub.s32 %s30, 2
        // Predicated region
        $region65: #{tpu_custom_call.1} parent=63 // pred_check
          %p648 = pneg %p153
        $region66: #{tpu_custom_call.1} parent=63 // pred_check_branch
          %650 = sbr.rel (%p648) target = $region68
        $region67: #{tpu_custom_call.1} parent=63 // pred_region
          %s651 = sand.u32 %s138, 1
          %s652 = scalar_lea.sflag [#allocation6], %s651
          %s653 = sand.u32 %s138, 1
          %s654 = smul.addr %s653, 8
          %s655 = scalar_lea.vmem [#allocation10], %s654
          %656 = dma.done %s652, 128
        $region68: #{tpu_custom_call.1} parent=63 // pred_fallthru
          _
        // Predicated region
        $region69: #{tpu_custom_call.1} parent=63 // pred_check
          %p657 = pneg %p181
        $region70: #{tpu_custom_call.1} parent=63 // pred_check_branch
          %659 = sbr.rel (%p657) target = $region72
        $region71: #{tpu_custom_call.1} parent=63 // pred_region
          %s660 = sand.u32 %s36, 1
          %s661 = scalar_lea.sflag [#allocation12], %s660
          %s662 = sand.u32 %s166, 1
          %s663 = smul.addr %s662, 8
          %s664 = scalar_lea.vmem [#allocation11], %s663
          %665 = dma.done %s661, 128
        $region72: #{tpu_custom_call.1} parent=63 // pred_fallthru
          _
        // Predicated region
        $region73: #{tpu_custom_call.1} parent=63 // pred_check
          %p666 = pneg %p209
        $region74: #{tpu_custom_call.1} parent=63 // pred_check_branch
          %668 = sbr.rel (%p666) target = $region76
        $region75: #{tpu_custom_call.1} parent=63 // pred_region
          %s669 = sand.u32 %s36, 1
          %s670 = scalar_lea.sflag [#allocation12], %s669
          %s671 = sand.u32 %s194, 1
          %s672 = smul.addr %s671, 8
          %s673 = scalar_lea.vmem [#allocation13], %s672
          %674 = dma.done %s670, 128
        $region76: #{tpu_custom_call.1} parent=63 // pred_fallthru
          _
        // Predicated region
        $region77: #{tpu_custom_call.1} parent=63 // pred_check
          %p675 = pneg %p237
        $region78: #{tpu_custom_call.1} parent=63 // pred_check_branch
          %677 = sbr.rel (%p675) target = $region80
        $region79: #{tpu_custom_call.1} parent=63 // pred_region
          %s678 = sand.u32 %s222, 1
          %s679 = scalar_lea.sflag [#allocation15], %s678
          %s680 = sand.u32 %s222, 1
          %s681 = smul.addr %s680, 8
          %s682 = scalar_lea.vmem [#allocation14], %s681
          %683 = dma.done %s679, 128
        $region80: #{tpu_custom_call.1} parent=63 // pred_fallthru
          _
      $region64: #{tpu_custom_call.1} parent=5 // pred_fallthru
        _
    $region6: #{tpu_custom_call.1} parent=1 // loop_footer
      %s34 = sadd.s32 1, %s30
    $region7: #{tpu_custom_call.1} parent=1 // loop_footer_branch
      %29 = sbr.rel target = $region3
    $region8: #{tpu_custom_call.1} parent=1 // loop_exit
      _
    %684 = vsyncpa [#allocation5], 1
    %s685 = scalar_lea.sflag [#allocation5], 1
    %686 = vsyncpa %s685, 1
    %687 = vsyncpa [#allocation8], 1
    %s688 = scalar_lea.sflag [#allocation8], 1
    %689 = vsyncpa %s688, 1
    %690 = vsyncpa [#allocation6], 1
    %s691 = scalar_lea.sflag [#allocation6], 1
    %692 = vsyncpa %s691, 1
    %693 = vsyncpa [#allocation12], 1
    %s694 = scalar_lea.sflag [#allocation12], 1
    %695 = vsyncpa %s694, 1
    %696 = vsyncpa [#allocation15], 1
    %s697 = scalar_lea.sflag [#allocation15], 1
    %698 = vsyncpa %s697, 1

</llo_original>
